<compile_context>
chip_gen: v6e
topology: v6e:2x2x1
jax: 0.10.0
libtpu: 0.0.40
codegen_flags: <defaults>
</compile_context>

<pallas_src>
import jax
import jax.numpy as jnp
import numpy as np
from jax.experimental import pallas as pl
from jax.experimental.pallas import tpu as pltpu

_LANE = 128
_MIN_TILE_HW = 256                       # lanes; below this per-step overhead dominates
_TARGET_BLOCK_BYTES = 2 * 1024 * 1024    # ~2 MiB x-blocks: >=85% HBM roofline on v5e/v6e/v7x
_TINY_BYTES = 192 * 1024                 # single-grid-step path only below this
_MIN_GRID_STEPS = 4                      # keep >=4 grid steps (v7x megacore + pipelining)
_SHALLOW_C = 16                          # fold batches into a block when C is this shallow


def _space_attention_kernel(center_ref, x_ref, o_ref):
    """center: (bt, c, 1); x/o: (bt, c, tile_hw).

    All math is per-lane (the channel reduction is along the sublane axis of each
    lane), so undefined lanes of a ragged edge block never contaminate valid lanes
    and are dropped by the masked store.
    """
    x = x_ref[...]
    logits = jnp.sum(
        x.astype(jnp.float32) * center_ref[...].astype(jnp.float32),
        axis=1, keepdims=True)                               # (bt, 1, tile_hw) f32
    sim = jax.nn.sigmoid(logits)
    # Re-read x from VMEM for the final multiply (keeps vreg live ranges short).
    o_ref[...] = x_ref[...] * sim.astype(o_ref.dtype)


def space_attention(cube, *,
                    target_block_bytes=_TARGET_BLOCK_BYTES,
                    min_grid_steps=_MIN_GRID_STEPS,
                    force_tiled=False):
    """cube: (bs, c, h, w), NCHW, matching the PyTorch module."""
    bs, c, h, w = cube.shape
    hw = h * w
    dtype = cube.dtype
    itemsize = jnp.dtype(dtype).itemsize

    # Center pixel per (batch, channel), taken from the original NCHW tensor.
    center = cube[:, :, h // 2, w // 2].reshape(bs, c, 1)      # (bs, c, 1)
    # Flatten spatial dims. No padding, no extra HBM pass: Pallas masks the ragged
    # last HW block.
    x = cube.reshape(bs, c, hw)

    hw_ceil = pl.cdiv(hw, _LANE) * _LANE
    row_bytes = c * itemsize                   # one lane column of one batch
    slab_bytes = row_bytes * hw_ceil           # one whole lane-padded (c, hw) batch slab
    total_bytes = bs * slab_bytes

    if total_bytes <= _TINY_BYTES and not force_tiled:
        # Truly tiny: one grid step (per-step overhead dominates any overlap win).
        bt, tile_hw = bs, hw
    else:
        bt = 1
        if bs > 1 and c <= _SHALLOW_C and 2 * slab_bytes <= target_block_bytes:
            # Shallow C: fold batches so blocks still reach the byte target, but
            # keep at least min_grid_steps batch groups for megacore/pipelining.
            bt_cap = min(target_block_bytes // slab_bytes,
                         max(1, bs // min(min_grid_steps, bs)))
            bt_cap = max(1, int(bt_cap))
            bt = max(d for d in range(1, bt_cap + 1) if bs % d == 0)
        if bt > 1:
            tile_hw = hw                       # whole spatial extent per block
        else:
            # Byte-targeted HW tile, multiple of 128 lanes.
            tile_hw = max(_MIN_TILE_HW,
                          (target_block_bytes // row_bytes) // _LANE * _LANE)
            # Cap the tile so the total grid has >= min_grid_steps steps
            # (v7x has 2 TensorCores; a (1,1)-ish grid leaves one idle).
            steps_needed = pl.cdiv(min_grid_steps, bs)
            if steps_needed > 1:
                cap = pl.cdiv(pl.cdiv(hw, steps_needed), _LANE) * _LANE
                tile_hw = min(tile_hw, max(cap, _MIN_TILE_HW))
            if tile_hw >= hw:
                tile_hw = hw                   # single full-extent tile, no ragged edge

    grid = (bs // bt, pl.cdiv(hw, tile_hw))

    # VMEM budget: double-buffered x + out blocks, double-buffered center, headroom.
    block_bytes = bt * c * tile_hw * itemsize
    center_block_bytes = bt * pl.cdiv(c, 8) * 8 * _LANE * itemsize
    vmem_limit = 2 * 2 * block_bytes + 2 * center_block_bytes + (2 << 20)
    vmem_limit = int(min(max(vmem_limit, 8 * 1024 * 1024), 48 * 1024 * 1024))

    cost = pl.CostEstimate(
        flops=3 * bs * c * hw,                 # channel dot + final multiply
        transcendentals=bs * hw,               # sigmoid
        bytes_accessed=int((2 * bs * c * hw + bs * c) * itemsize),
    )

    out = pl.pallas_call(
        _space_attention_kernel,
        out_shape=jax.ShapeDtypeStruct((bs, c, hw), dtype),
        grid_spec=pltpu.PrefetchScalarGridSpec(
            num_scalar_prefetch=0,
            grid=grid,
            in_specs=[
                # Center block index is constant along the (innermost) HW axis,
                # so it is DMA'd once per batch group, not once per HW tile.
                pl.BlockSpec((bt, c, 1), lambda b, j: (b, 0, 0)),
                # NOTE: on v7x, pipeline_mode=pl.Buffered(3) on this spec is worth
                # sweeping (within the vmem_limit budget above).
                pl.BlockSpec((bt, c, tile_hw), lambda b, j: (b, 0, j)),
            ],
            out_specs=pl.BlockSpec((bt, c, tile_hw), lambda b, j: (b, 0, j)),
        ),
        compiler_params=pltpu.CompilerParams(
            dimension_semantics=("parallel", "parallel"),
            vmem_limit_bytes=vmem_limit,
        ),
        cost_estimate=cost,
    )(center, x)

    return out.reshape(bs, c, h, w)


def _reference(cube):
    bs, c, h, w = cube.shape
    cube_key = cube.reshape(bs, c, -1).transpose(0, 2, 1)            # (bs, hw, c)
    cube_center = cube[:, :, h // 2:h // 2 + 1, w // 2:w // 2 + 1]   # (bs, c, 1, 1)
    cube_center = cube_center.squeeze(-1)                            # (bs, c, 1)
    sim = jnp.matmul(cube_key, cube_center)                          # (bs, hw, 1)
    sim = sim.transpose(0, 2, 1).reshape(bs, 1, h, w)
    sim = jax.nn.sigmoid(sim)
    return cube * sim


if __name__ == "__main__":
    key = jax.random.PRNGKey(0)
    k1, k2, k3 = jax.random.split(key, 3)

    # 1) Toy module shape: tiny single-grid-step path.
    cube = jax.random.normal(k1, (2, 4, 16, 16), dtype=jnp.float32)
    out = jax.block_until_ready(space_attention(cube))
    np.testing.assert_allclose(np.asarray(out), np.asarray(_reference(cube)),
                               rtol=1e-5, atol=1e-5)

    # 2) Non-128-multiple HW, forced tiled path with a small byte target:
    #    exercises the ragged (masked) edge block and the megacore tile cap.
    cube2 = jax.random.normal(k2, (2, 8, 20, 20), dtype=jnp.float32)
    out2 = jax.block_until_ready(
        space_attention(cube2, target_block_bytes=8 * 1024, force_tiled=True))
    np.testing.assert_allclose(np.asarray(out2), np.asarray(_reference(cube2)),
                               rtol=1e-5, atol=1e-5)

    # 3) Shallow-C / many-batch forced tiled path: exercises batch folding (bt > 1).
    cube3 = jax.random.normal(k3, (8, 8, 16, 16), dtype=jnp.float32)
    out3 = jax.block_until_ready(space_attention(cube3, force_tiled=True))
    np.testing.assert_allclose(np.asarray(out3), np.asarray(_reference(cube3)),
                               rtol=1e-5, atol=1e-5)

    print("KERNEL_OK")
</pallas_src>

<mosaic_0001>
module attributes {stable_mosaic.version = 11 : i64} {
  func.func @_space_attention_kernel(%arg0: i32, %arg1: i32, %arg2: memref<2x4x1xf32, #tpu.memory_space<vmem>>, %arg3: memref<2x4x256xf32, #tpu.memory_space<vmem>>, %arg4: memref<2x4x256xf32, #tpu.memory_space<vmem>>) attributes {dimension_semantics = [#tpu.dimension_semantics<parallel>, #tpu.dimension_semantics<parallel>], iteration_bounds = array<i64: 1, 1>, scalar_prefetch = 0 : i64, scratch_operands = 0 : i64, tpu.core_type = #tpu.core_type<tc>, window_params = [{transform_indices = @transform_0, window_bounds = array<i64: 2, 4, 1>}, {transform_indices = @transform_1, window_bounds = array<i64: 2, 4, 256>}, {transform_indices = @transform_2, window_bounds = array<i64: 2, 4, 256>}]} {
    %c0 = arith.constant 0 : index
    %c0_0 = arith.constant 0 : index
    %c0_1 = arith.constant 0 : index
    %0 = vector.load %arg3[%c0, %c0_0, %c0_1] : memref<2x4x256xf32, #tpu.memory_space<vmem>>, vector<2x4x256xf32>
    %c0_2 = arith.constant 0 : index
    %c0_3 = arith.constant 0 : index
    %c0_4 = arith.constant 0 : index
    %1 = vector.load %arg2[%c0_2, %c0_3, %c0_4] : memref<2x4x1xf32, #tpu.memory_space<vmem>>, vector<2x4x1xf32>
    %2 = vector.broadcast %1 : vector<2x4x1xf32> to vector<2x4x256xf32>
    %3 = arith.mulf %0, %2 : vector<2x4x256xf32>
    %cst = arith.constant dense<0.000000e+00> : vector<2x256xf32>
    %4 = vector.multi_reduction <add>, %3, %cst [1] : vector<2x4x256xf32> to vector<2x256xf32>
    %5 = vector.shape_cast %4 : vector<2x256xf32> to vector<2x1x256xf32>
    %6 = arith.negf %5 : vector<2x1x256xf32>
    %7 = math.exp %6 : vector<2x1x256xf32>
    %cst_5 = arith.constant 1.000000e+00 : f32
    %8 = vector.broadcast %cst_5 : f32 to vector<2x1x256xf32>
    %9 = arith.addf %8, %7 : vector<2x1x256xf32>
    %10 = arith.divf %8, %9 : vector<2x1x256xf32>
    %c0_6 = arith.constant 0 : index
    %c0_7 = arith.constant 0 : index
    %c0_8 = arith.constant 0 : index
    %11 = vector.load %arg3[%c0_6, %c0_7, %c0_8] : memref<2x4x256xf32, #tpu.memory_space<vmem>>, vector<2x4x256xf32>
    %12 = vector.broadcast %10 : vector<2x1x256xf32> to vector<2x4x256xf32>
    %13 = arith.mulf %11, %12 : vector<2x4x256xf32>
    %c0_9 = arith.constant 0 : index
    %c0_10 = arith.constant 0 : index
    %c0_11 = arith.constant 0 : index
    %14 = vector.load %arg4[%c0_9, %c0_10, %c0_11] : memref<2x4x256xf32, #tpu.memory_space<vmem>>, vector<2x4x256xf32>
    tpu.vector_store %arg4[%c0_9, %c0_10, %c0_11], %13 {strides = array<i32>} : memref<2x4x256xf32, #tpu.memory_space<vmem>>, vector<2x4x256xf32>,
    return
  }
  func.func @transform_0(%arg0: i32, %arg1: i32) -> (i32, i32, i32) {
    %c0_i32 = arith.constant 0 : i32
    %c0_i32_0 = arith.constant 0 : i32
    %c0_i32_1 = arith.constant 0 : i32
    return %arg0, %c0_i32, %c0_i32_0 : i32, i32, i32
  }
  func.func @transform_1(%arg0: i32, %arg1: i32) -> (i32, i32, i32) {
    %c0_i32 = arith.constant 0 : i32
    %c0_i32_0 = arith.constant 0 : i32
    return %arg0, %c0_i32, %arg1 : i32, i32, i32
  }
  func.func @transform_2(%arg0: i32, %arg1: i32) -> (i32, i32, i32) {
    %c0_i32 = arith.constant 0 : i32
    %c0_i32_0 = arith.constant 0 : i32
    return %arg0, %c0_i32, %arg1 : i32, i32, i32
  }
}

</mosaic_0001>

<llo_original>
// kernel: tpu_custom_call.1
$region0: #{tpu_custom_call.1}
  #allocation0 [shape = 'u32[]', space=smem, size = 0x4, offset = 0x4, fixed_abs, tag = 'smem constant byte address 0x4 - core index']
  #allocation1 [shape = 'u32[144,128]{1,0:T(1,128)}', space=vmem, size = 0x12000, scoped, tag = 'internal scratch']
  %s0 = inlined_call_operand.vmem [shape: f32[2,4,1], index: 0, kind: input, shape index: {}]
  %s1 = inlined_call_operand.hbm [shape: f32[2,4,256], index: 1, kind: input, shape index: {}]
  %s2 = inlined_call_operand.hbm [shape: f32[2,4,256], index: 2, kind: output, shape index: {}]
  %s3 = sld [smem:[#allocation0]]
  $region22: #{tpu_custom_call.1} parent=0
    _
  %s5 = ssub.s32 1, %s3
  %s6 = scalar_select 0, %s5, %s3
  $region1: #{tpu_custom_call.1} parent=0
    #allocation2 [shape = 'u8[8192]{0}', space=vmem, size = 0x2000, scoped, tag = 'input window, operand 1, single buffered']
    #allocation3 [shape = 's32[1]{0}', space=sflag, size = 0x4, scoped, tag = 'scoped memory for tpu_custom_call.1']
    #allocation4 [shape = 's32[1]{0}', space=sflag, size = 0x4, scoped, tag = 'scoped memory for tpu_custom_call.1']
    #allocation5 [shape = 'u8[8192]{0}', space=vmem, size = 0x2000, scoped, tag = 'output window, operand 0, single buffered']
    %7 = vsyncpa [#allocation3], 0
    %8 = vsyncpa [#allocation4], 0
    // Predicated region
    $region2: #{tpu_custom_call.1} parent=1 // pred_check
      _
    $region3: #{tpu_custom_call.1} parent=1 // pred_check_branch
      %10 = sbr.rel (0) target = $region5
    $region4: #{tpu_custom_call.1} parent=1 // pred_region
      _
    $region5: #{tpu_custom_call.1} parent=1 // pred_fallthru
      _
    // Predicated region
    $region6: #{tpu_custom_call.1} parent=1 // pred_check
      _
    $region7: #{tpu_custom_call.1} parent=1 // pred_check_branch
      %12 = sbr.rel (0) target = $region9
    $region8: #{tpu_custom_call.1} parent=1 // pred_region
      %s14 = ssub.s32 256, 256
      %15 = vsyncadd [#allocation3], %s14
      %s16 = sshll.u32 [#allocation2], 4
      %s17 = int_to_ptr.vmem [resolvable:$true] %s16
      %22 = dma.hbm_to_vmem [thread:$0]  %s1, 256, %s17, [#allocation3], 128, 128, 8
    $region9: #{tpu_custom_call.1} parent=1 // pred_fallthru
      _
    // Predicated region
    $region10: #{tpu_custom_call.1} parent=1 // pred_check
      _
    $region11: #{tpu_custom_call.1} parent=1 // pred_check_branch
      %24 = sbr.rel (0) target = $region13
    $region12: #{tpu_custom_call.1} parent=1 // pred_region
      %25 = dma.done [#allocation3], 256
    $region13: #{tpu_custom_call.1} parent=1 // pred_fallthru
      _
    %v26 = vld [vmem:[#allocation2] sm:$0xff]
    %v27 = vld [vmem:[#allocation2 + $0x8] sm:$0xff]
    %v28 = vld [vmem:[%s0] sm:$0xf]
    %v29 = vld [vmem:[%s0 + $0x4] sm:$0xf]
    %31 = vset.pattern.permute.xlu0 0
    %32 = vperm.xlu0 %31, %v28
    %v33 = vpop.permute.xlu0 %32
    %35 = vset.pattern.permute.xlu0 0
    %36 = vperm.xlu0 %35, %v29
    %v37 = vpop.permute.xlu0 %36
    %v39 = vunpack.c.l.s4 839922192
    %v40 = vunpack.c.0.s8 %v39
    %v41 = vlaneseq
    %v42 = vshrl.u32 %v41, 7
    %v43 = vsub.s32 %v40, %v42
    %v44 = vrot.slane %v33, %v43
    %v46 = vunpack.c.l.s4 839922192
    %v47 = vunpack.c.0.s8 %v46
    %v48 = vlaneseq
    %v49 = vshrl.u32 %v48, 7
    %v50 = vsub.s32 %v47, %v49
    %v51 = vrot.slane %v37, %v50
    %v54 = vmul.f32 %v26, %v44
    %v55 = vmul.f32 %v27, %v51
    %v58 = vcombine.high %v54, %v54
    %v59 = vcombine.high %v55, %v55
    %vm62 = vcmask 1043456
    %v63 = vsel %vm62, %v54, 0.0
    %v64 = vrot.slane %v63, 4
    %v65 = vadd.f32 %v63, %v64
    %v66 = vrot.slane %v65, 2
    %v67 = vadd.f32 %v65, %v66
    %v68 = vrot.slane %v67, 1
    %v69 = vadd.f32 %v67, %v68
    %v70 = vsel %vm62, %v58, 0.0
    %v71 = vrot.slane %v70, 4
    %v72 = vadd.f32 %v70, %v71
    %v73 = vrot.slane %v72, 2
    %v74 = vadd.f32 %v72, %v73
    %v75 = vrot.slane %v74, 1
    %v76 = vadd.f32 %v74, %v75
    %v77 = vsel %vm62, %v55, 0.0
    %v78 = vrot.slane %v77, 4
    %v79 = vadd.f32 %v77, %v78
    %v80 = vrot.slane %v79, 2
    %v81 = vadd.f32 %v79, %v80
    %v82 = vrot.slane %v81, 1
    %v83 = vadd.f32 %v81, %v82
    %v84 = vsel %vm62, %v59, 0.0
    %v85 = vrot.slane %v84, 4
    %v86 = vadd.f32 %v84, %v85
    %v87 = vrot.slane %v86, 2
    %v88 = vadd.f32 %v86, %v87
    %v89 = vrot.slane %v88, 1
    %v90 = vadd.f32 %v88, %v89
    %v91 = vxor.u32 %v69, 2147483648
    %v92 = vxor.u32 %v76, 2147483648
    %v93 = vxor.u32 %v83, 2147483648
    %v94 = vxor.u32 %v90, 2147483648
    %v95 = vmul.f32 %v91, 1.442695
    %v96 = vpow.pop %v95
    %v97 = vmul.f32 %v92, 1.442695
    %v98 = vpow.pop %v97
    %v99 = vmul.f32 %v93, 1.442695
    %v100 = vpow.pop %v99
    %v101 = vmul.f32 %v94, 1.442695
    %v102 = vpow.pop %v101
    %v103 = vadd.f32 %v96, 1.0
    %v104 = vadd.f32 %v98, 1.0
    %v105 = vadd.f32 %v100, 1.0
    %v106 = vadd.f32 %v102, 1.0
    %v107 = vrcp.pop %v103
    %v108 = vmul.f32 1.0, %v107
    %v109 = vrcp.pop %v104
    %v110 = vmul.f32 1.0, %v109
    %v111 = vrcp.pop %v105
    %v112 = vmul.f32 1.0, %v111
    %v113 = vrcp.pop %v106
    %v114 = vmul.f32 1.0, %v113
    %v119 = vcombine.low %v108, %v110
    %v120 = vcombine.low %v112, %v114
    %v123 = vmul.f32 %v26, %v119
    %v124 = vmul.f32 %v27, %v120
    %125 = vst [vmem:[#allocation5] sm:$0xff] %v123
    %126 = vst [vmem:[#allocation5 + $0x8] sm:$0xff] %v124
    // Predicated region
    $region14: #{tpu_custom_call.1} parent=1 // pred_check
      _
    $region15: #{tpu_custom_call.1} parent=1 // pred_check_branch
      %128 = sbr.rel (0) target = $region17
    $region16: #{tpu_custom_call.1} parent=1 // pred_region
      %s130 = ssub.s32 256, 256
      %131 = vsyncadd [#allocation4], %s130
      %s132 = sshll.u32 [#allocation5], 4
      %s133 = int_to_ptr.vmem [resolvable:$true] %s132
      %138 = dma.vmem_to_hbm [thread:$0]  %s133, 256, %s2, [#allocation4], 128, 128, 8
    $region17: #{tpu_custom_call.1} parent=1 // pred_fallthru
      _
    // Predicated region
    $region18: #{tpu_custom_call.1} parent=1 // pred_check
      _
    $region19: #{tpu_custom_call.1} parent=1 // pred_check_branch
      %140 = sbr.rel (0) target = $region21
    $region20: #{tpu_custom_call.1} parent=1 // pred_region
      %141 = dma.done [#allocation4], 256
    $region21: #{tpu_custom_call.1} parent=1 // pred_fallthru
      _
    %142 = vsyncpa [#allocation3], 1
    %143 = vsyncpa [#allocation4], 1

</llo_original>
